<compile_context>
chip_gen: v6e
topology: v6e:2x2x1
jax: 0.10.0
libtpu: 0.0.40
codegen_flags: <defaults>
</compile_context>

<pallas_src>
import functools

import jax
import jax.numpy as jnp
from jax import lax
from jax.experimental import pallas as pl
from jax.experimental.pallas import tpu as pltpu


def _round_up(n, m):
    return ((n + m - 1) // m) * m


# ---------- Fast path: whole problem in a single VMEM block ----------
def _fused_small_kernel(x_ref, w_ref, o_ref):
    z = jnp.dot(x_ref[...], w_ref[...], preferred_element_type=jnp.float32)
    o_ref[...] = jax.nn.sigmoid(z).astype(o_ref.dtype)


# ---------- General path: (M, N, K)-tiled matmul with f32 accumulator ----------
def _tiled_kernel(x_ref, w_ref, o_ref, acc_ref, *, k_rem):
    k = pl.program_id(2)
    nk = pl.num_programs(2)

    @pl.when(k == 0)
    def _():
        acc_ref[...] = jnp.zeros_like(acc_ref)

    x = x_ref[...]
    w = w_ref[...]
    if k_rem:  # static: K % tk != 0 -> zero the out-of-bounds part of the ragged last K block
        is_last = k == nk - 1
        col = lax.broadcasted_iota(jnp.int32, x.shape, dimension=1)
        x = jnp.where(jnp.logical_and(is_last, col >= k_rem), jnp.zeros_like(x), x)
        row = lax.broadcasted_iota(jnp.int32, w.shape, dimension=0)
        w = jnp.where(jnp.logical_and(is_last, row >= k_rem), jnp.zeros_like(w), w)

    acc_ref[...] += jnp.dot(x, w, preferred_element_type=jnp.float32)

    @pl.when(k == nk - 1)
    def _():
        o_ref[...] = jax.nn.sigmoid(acc_ref[...]).astype(o_ref.dtype)


def my_model_forward(x, w1, *, compute_dtype=None, max_tm=512):
    """y = sigmoid(x @ w1) as a Pallas TPU kernel (forward pass of MyModel)."""
    M, K = x.shape
    Kw, N = w1.shape
    assert K == Kw, "inner dimensions must match"
    out_dtype = x.dtype

    # Optional bf16 compute for large shapes on bf16-native MXUs (v5e/v6e/v7x).
    if compute_dtype is not None and x.dtype != compute_dtype:
        x = x.astype(compute_dtype)
        w1 = w1.astype(compute_dtype)
    isz = jnp.dtype(x.dtype).itemsize
    osz = jnp.dtype(out_dtype).itemsize

    cost = pl.CostEstimate(
        flops=2 * M * K * N,
        transcendentals=M * N,
        bytes_accessed=(M * K + K * N) * isz + M * N * osz,
    )

    # ---- Fast path: tiny problems fit in one block; no padding, no slicing.
    total_bytes = (M * K + K * N) * isz + M * N * (osz + 4)
    if total_bytes <= 2 * 1024 * 1024:
        return pl.pallas_call(
            _fused_small_kernel,
            out_shape=jax.ShapeDtypeStruct((M, N), out_dtype),
            grid=(1,),
            in_specs=[
                pl.BlockSpec((M, K), lambda i: (0, 0)),
                pl.BlockSpec((K, N), lambda i: (0, 0)),
            ],
            out_specs=pl.BlockSpec((M, N), lambda i: (0, 0)),
            cost_estimate=cost,
        )(x, w1)

    # ---- General path: tile all three dimensions.
    SUB = {4: 8, 2: 16, 1: 32}.get(isz, 8)   # sublane packing of the compute dtype

    tn = N if N <= 256 else 256              # multiple of 128/256, or full N
    tk = K if K <= 512 else 512              # multiple of 128/256, or full K
    grid_n = pl.cdiv(N, tn)
    grid_k = pl.cdiv(K, tk)
    k_rem = (K % tk) if grid_k > 1 else 0

    # Single-buffer the weight only when it is one resident block (constant index_map).
    w_buffers = 1 if (grid_n == 1 and grid_k == 1) else 2

    # Row tile from a conservative 20 MiB tile budget:
    # double-buffered x & out tiles + weight buffers + f32 accumulator.
    budget = 20 * 1024 * 1024
    fixed = w_buffers * tk * tn * isz
    per_row = 2 * tk * isz + 2 * tn * osz + tn * 4
    tm = max(SUB, ((budget - fixed) // per_row) // SUB * SUB)
    tm = min(tm, max_tm, _round_up(M, SUB))
    if M > SUB:
        # Keep >= 2 steps on the parallel M axis so both v7x TensorCores get work.
        tm = min(tm, _round_up(pl.cdiv(M, 2), SUB))
    grid_m = pl.cdiv(M, tm)

    if w_buffers == 1:
        w_spec = pl.BlockSpec((tk, tn), lambda i, j, k: (k, j),
                              pipeline_mode=pl.Buffered(1))
    else:
        w_spec = pl.BlockSpec((tk, tn), lambda i, j, k: (k, j))

    return pl.pallas_call(
        functools.partial(_tiled_kernel, k_rem=k_rem),
        out_shape=jax.ShapeDtypeStruct((M, N), out_dtype),
        grid=(grid_m, grid_n, grid_k),
        in_specs=[
            pl.BlockSpec((tm, tk), lambda i, j, k: (i, k)),
            w_spec,
        ],
        out_specs=pl.BlockSpec((tm, tn), lambda i, j, k: (i, j)),
        scratch_shapes=[pltpu.VMEM((tm, tn), jnp.float32)],
        compiler_params=pltpu.CompilerParams(
            dimension_semantics=("parallel", "parallel", "arbitrary"),
            vmem_limit_bytes=32 * 1024 * 1024,
        ),
        cost_estimate=cost,
    )(x, w1)


def my_model_reference(x, w1):
    return jax.nn.sigmoid(x @ w1)


if __name__ == "__main__":
    key = jax.random.PRNGKey(0)
    kx, kw, kx2, kw2 = jax.random.split(key, 4)

    # Small shapes consistent with the module: batch=16, D_in=32, D_out=16
    batch, D_in, D_out = 16, 32, 16
    x = jax.random.normal(kx, (batch, D_in), dtype=jnp.float32)
    w1 = jax.random.normal(kw, (D_in, D_out), dtype=jnp.float32)  # mirrors torch.randn(D_in, D_out)

    y = jax.block_until_ready(my_model_forward(x, w1))
    y_ref = my_model_reference(x, w1)
    assert y.shape == (batch, D_out)
    assert jnp.allclose(y, y_ref, atol=1e-5, rtol=1e-5)

    # Larger, deliberately ragged shapes exercise the tiled general path
    # (ragged M and N blocks + ragged last K block handled by in-kernel masking).
    M2, K2, N2 = 300, 600, 300
    x2 = jax.random.normal(kx2, (M2, K2), dtype=jnp.float32) * 0.05
    w2 = jax.random.normal(kw2, (K2, N2), dtype=jnp.float32)
    y2 = jax.block_until_ready(my_model_forward(x2, w2))
    y2_ref = my_model_reference(x2, w2)
    assert y2.shape == (M2, N2)
    assert jnp.allclose(y2, y2_ref, atol=5e-4, rtol=1e-3)

    # TODO(synk): MySigmoid.backward (custom VJP) not implemented; only the forward pass is required.
    print("KERNEL_OK")
</pallas_src>

<mosaic_0001>
module attributes {stable_mosaic.version = 11 : i64} {
  func.func @_fused_small_kernel(%arg0: i32, %arg1: memref<16x32xf32, #tpu.memory_space<vmem>>, %arg2: memref<32x16xf32, #tpu.memory_space<vmem>>, %arg3: memref<16x16xf32, #tpu.memory_space<vmem>>) attributes {dimension_semantics = [#tpu.dimension_semantics<arbitrary>], iteration_bounds = array<i64: 1>, scalar_prefetch = 0 : i64, scratch_operands = 0 : i64, tpu.core_type = #tpu.core_type<tc>, window_params = [{pipeline_mode = #tpu.pipeline_mode<synchronous>, transform_indices = @transform_0, window_bounds = array<i64: 16, 32>}, {pipeline_mode = #tpu.pipeline_mode<synchronous>, transform_indices = @transform_1, window_bounds = array<i64: 32, 16>}, {pipeline_mode = #tpu.pipeline_mode<synchronous>, transform_indices = @transform_2, window_bounds = array<i64: 16, 16>}]} {
    %c0 = arith.constant 0 : index
    %c0_0 = arith.constant 0 : index
    %0 = vector.load %arg1[%c0, %c0_0] : memref<16x32xf32, #tpu.memory_space<vmem>>, vector<16x32xf32>
    %c0_1 = arith.constant 0 : index
    %c0_2 = arith.constant 0 : index
    %1 = vector.load %arg2[%c0_1, %c0_2] : memref<32x16xf32, #tpu.memory_space<vmem>>, vector<32x16xf32>
    %cst = arith.constant dense<0.000000e+00> : vector<16x16xf32>
    %2 = tpu.matmul %0, %1, %cst {dimension_numbers = #tpu.dot_dimension_numbers<[1], [0], [0], [1], [0, 0, 1, 1], [], []>} : vector<16x32xf32>, vector<32x16xf32>, vector<16x16xf32> -> vector<16x16xf32>
    %3 = arith.negf %2 : vector<16x16xf32>
    %4 = math.exp %3 : vector<16x16xf32>
    %cst_3 = arith.constant 1.000000e+00 : f32
    %5 = vector.broadcast %cst_3 : f32 to vector<16x16xf32>
    %6 = arith.addf %5, %4 : vector<16x16xf32>
    %7 = arith.divf %5, %6 : vector<16x16xf32>
    %c0_4 = arith.constant 0 : index
    %c0_5 = arith.constant 0 : index
    %8 = vector.load %arg3[%c0_4, %c0_5] : memref<16x16xf32, #tpu.memory_space<vmem>>, vector<16x16xf32>
    tpu.vector_store %arg3[%c0_4, %c0_5], %7 {strides = array<i32>} : memref<16x16xf32, #tpu.memory_space<vmem>>, vector<16x16xf32>,
    return
  }
  func.func @transform_0(%arg0: i32) -> (i32, i32) {
    %c0_i32 = arith.constant 0 : i32
    %c0_i32_0 = arith.constant 0 : i32
    %c0_i32_1 = arith.constant 0 : i32
    return %c0_i32, %c0_i32_0 : i32, i32
  }
  func.func @transform_1(%arg0: i32) -> (i32, i32) {
    %c0_i32 = arith.constant 0 : i32
    %c0_i32_0 = arith.constant 0 : i32
    %c0_i32_1 = arith.constant 0 : i32
    return %c0_i32, %c0_i32_0 : i32, i32
  }
  func.func @transform_2(%arg0: i32) -> (i32, i32) {
    %c0_i32 = arith.constant 0 : i32
    %c0_i32_0 = arith.constant 0 : i32
    %c0_i32_1 = arith.constant 0 : i32
    return %c0_i32, %c0_i32_0 : i32, i32
  }
}

</mosaic_0001>

<llo_original>
// kernel: tpu_custom_call.1
$region0: #{tpu_custom_call.1}
  #allocation0 [shape = 'u32[]', space=smem, size = 0x4, offset = 0x4, fixed_abs, tag = 'smem constant byte address 0x4 - core index']
  #allocation1 [shape = 'u32[144,128]{1,0:T(1,128)}', space=vmem, size = 0x12000, scoped, tag = 'internal scratch']
  %s0 = inlined_call_operand.vmem [shape: f32[16,32], index: 0, kind: input, shape index: {}]
  %s1 = inlined_call_operand.vmem [shape: f32[32,16], index: 1, kind: input, shape index: {}]
  %s2 = inlined_call_operand.hbm [shape: f32[16,16], index: 2, kind: output, shape index: {}]
  %s3 = sld [smem:[#allocation0]]
  $region18: #{tpu_custom_call.1} parent=0
    _
  %s5 = ssub.s32 1, %s3
  %s6 = scalar_select 0, %s5, %s3
  $region1: #{tpu_custom_call.1} parent=0
    #allocation2 [shape = 'u8[8192]{0}', space=vmem, size = 0x2000, scoped, tag = 'output window, operand 0, single buffered']
    #allocation3 [shape = 's32[1]{0}', space=sflag, size = 0x4, scoped, tag = 'scoped memory for tpu_custom_call.1']
    %7 = vsyncpa [#allocation3], 0
    // Predicated region
    $region2: #{tpu_custom_call.1} parent=1 // pred_check
      _
    $region3: #{tpu_custom_call.1} parent=1 // pred_check_branch
      %9 = sbr.rel (0) target = $region5
    $region4: #{tpu_custom_call.1} parent=1 // pred_region
      _
    $region5: #{tpu_custom_call.1} parent=1 // pred_fallthru
      _
    // Predicated region
    $region6: #{tpu_custom_call.1} parent=1 // pred_check
      _
    $region7: #{tpu_custom_call.1} parent=1 // pred_check_branch
      %11 = sbr.rel (0) target = $region9
    $region8: #{tpu_custom_call.1} parent=1 // pred_region
      _
    $region9: #{tpu_custom_call.1} parent=1 // pred_fallthru
      _
    %v12 = vld [vmem:[%s0] sm:$0xff]
    %v13 = vld [vmem:[%s0 + $0x8] sm:$0xff]
    %v14 = vld [vmem:[%s1] sm:$0xff]
    %v15 = vld [vmem:[%s1 + $0x8] sm:$0xff]
    %v16 = vld [vmem:[%s1 + $0x10] sm:$0xff]
    %v17 = vld [vmem:[%s1 + $0x18] sm:$0xff]
    %vm18 = vcmask 261120
    %v20 = vsel %vm18, %v12, 0
    %v23 = vsel %vm18, %v13, 0
    %25 = vmatprep.subr.mxu0 0.0
    %26 = vmatpush1.msra.mxu0 0.0
    %27 = vmatprep.subr.mxu0 0.0
    %28 = vmatpush1.msra.mxu0 0.0
    %29 = vmatprep.subr.mxu0 0.0
    %30 = vmatpush1.msra.mxu0 0.0
    %31 = vmatprep.subr.mxu0 0.0
    %32 = vmatpush1.msra.mxu0 0.0
    %33 = vmatprep.subr.mxu0 0.0
    %34 = vmatpush1.msra.mxu0 0.0
    %35 = vmatprep.subr.mxu0 0.0
    %36 = vmatpush1.msra.mxu0 0.0
    %37 = vmatprep.subr.mxu0 0.0
    %38 = vmatpush1.msra.mxu0 0.0
    %39 = vmatprep.subr.mxu0 0.0
    %40 = vmatpush1.msra.mxu0 0.0
    %41 = vmatprep.subr.mxu0 0.0
    %42 = vmatpush1.msra.mxu0 0.0
    %43 = vmatprep.subr.mxu0 0.0
    %44 = vmatpush1.msra.mxu0 0.0
    %45 = vmatprep.subr.mxu0 0.0
    %46 = vmatpush1.msra.mxu0 0.0
    %47 = vmatprep.subr.mxu0 0.0
    %48 = vmatpush1.msra.mxu0 0.0
    %49 = vmatprep.subr.mxu0 0.0
    %50 = vmatpush1.msra.mxu0 %v17
    %51 = vmatprep.subr.mxu0 0.0
    %52 = vmatpush1.msra.mxu0 %v16
    %53 = vmatprep.subr.mxu0 0.0
    %54 = vmatpush1.msra.mxu0 %v15
    %55 = vmatprep.subr.mxu0 0.0
    %56 = vmatpush1.msra.mxu0 %v14
    %57 = vmatprep.subr.mxu0 0.0
    %58 = vmatpush2.msra.mxu0 0.0
    %59 = vmatprep.subr.mxu0 0.0
    %60 = vmatpush2.msra.mxu0 0.0
    %61 = vmatprep.subr.mxu0 0.0
    %62 = vmatpush2.msra.mxu0 0.0
    %63 = vmatprep.subr.mxu0 0.0
    %64 = vmatpush2.msra.mxu0 0.0
    %65 = vmatprep.subr.mxu0 0.0
    %66 = vmatpush2.msra.mxu0 0.0
    %67 = vmatprep.subr.mxu0 0.0
    %68 = vmatpush2.msra.mxu0 0.0
    %69 = vmatprep.subr.mxu0 0.0
    %70 = vmatpush2.msra.mxu0 0.0
    %71 = vmatprep.subr.mxu0 0.0
    %72 = vmatpush2.msra.mxu0 0.0
    %73 = vmatprep.subr.mxu0 0.0
    %74 = vmatpush2.msra.mxu0 0.0
    %75 = vmatprep.subr.mxu0 0.0
    %76 = vmatpush2.msra.mxu0 0.0
    %77 = vmatprep.subr.mxu0 0.0
    %78 = vmatpush2.msra.mxu0 0.0
    %79 = vmatprep.subr.mxu0 0.0
    %80 = vmatpush2.msra.mxu0 0.0
    %81 = vmatprep.subr.mxu0 0.0
    %82 = vmatpush2.msra.mxu0 0.0
    %83 = vmatprep.subr.mxu0 0.0
    %84 = vmatpush2.msra.mxu0 0.0
    %85 = vmatprep.subr.mxu0 0.0
    %86 = vmatpush2.msra.mxu0 0.0
    %87 = vmatprep.subr.mxu0 0.0
    %88 = vmatpush2.msra.mxu0 0.0
    %89 = vmatprep.mubr.f32.mxu0 0.0
    %90 = vmatmul.mubr.f32.gmra.mxu0 %v20
    %v91 = vpop.f32.mrf.mxu0
    %v92 = vadd.f32 0.0, %v91
    %v93 = vpop.f32.mrf.mxu0
    %94 = vmatprep.mubr.f32.mxu0 0.0
    %95 = vmatmul.mubr.f32.gmra.mxu0 %v23
    %v96 = vpop.f32.mrf.mxu0
    %v97 = vadd.f32 0.0, %v96
    %v98 = vpop.f32.mrf.mxu0
    %99 = vdwg.mxu0
    %v100 = vxor.u32 %v92, 2147483648
    %v101 = vxor.u32 %v97, 2147483648
    %v102 = vmul.f32 %v100, 1.442695
    %v103 = vpow.pop %v102
    %v104 = vmul.f32 %v101, 1.442695
    %v105 = vpow.pop %v104
    %v106 = vadd.f32 %v103, 1.0
    %v107 = vadd.f32 %v105, 1.0
    %v108 = vrcp.pop %v106
    %v109 = vmul.f32 1.0, %v108
    %v110 = vrcp.pop %v107
    %v111 = vmul.f32 1.0, %v110
    %vm112 = vcmask 130048
    %113 = vst.msk [vmem:[#allocation2] sm:$0xff] %vm112, %v109
    %114 = vst.msk [vmem:[#allocation2 + $0x8] sm:$0xff] %vm112, %v111
    // Predicated region
    $region10: #{tpu_custom_call.1} parent=1 // pred_check
      _
    $region11: #{tpu_custom_call.1} parent=1 // pred_check_branch
      %116 = sbr.rel (0) target = $region13
    $region12: #{tpu_custom_call.1} parent=1 // pred_region
      %s118 = ssub.s32 256, 256
      %119 = vsyncadd [#allocation3], %s118
      %s120 = sshll.u32 [#allocation2], 4
      %s121 = int_to_ptr.vmem [resolvable:$true] %s120
      %126 = dma.vmem_to_hbm [thread:$0]  %s121, 256, %s2, [#allocation3], 128, 128, 8
    $region13: #{tpu_custom_call.1} parent=1 // pred_fallthru
      _
    // Predicated region
    $region14: #{tpu_custom_call.1} parent=1 // pred_check
      _
    $region15: #{tpu_custom_call.1} parent=1 // pred_check_branch
      %128 = sbr.rel (0) target = $region17
    $region16: #{tpu_custom_call.1} parent=1 // pred_region
      %129 = dma.done [#allocation3], 256
    $region17: #{tpu_custom_call.1} parent=1 // pred_fallthru
      _
    %130 = vsyncpa [#allocation3], 1

</llo_original>
